<compile_context>
chip_gen: v7x
topology: tpu7x:2x2x1
jax: 0.10.0
libtpu: 0.0.40
codegen_flags: <defaults>
</compile_context>

<pallas_src>
import jax
import jax.numpy as jnp
from jax.experimental import pallas as pl
from jax.experimental.pallas import tpu as pltpu


def _make_kernel(n_points):
    """Fused kernel; n_points (points per batch element) is compile-time."""

    def kernel(x_ref, w1_ref, b1_ref, w2_ref, b2_ref,
               wl1_ref, bl1_ref, wl2_ref, bl2_ref,
               wo_ref, bo_ref, o_ref):
        m, _ = x_ref.shape            # m = tb * n_points
        tb = m // n_points
        c2 = w2_ref.shape[1]

        # Kernel-size-1 Conv1d layers == per-point channel matmuls on a
        # (tb*N, C) slab, so every MXU push sees tb*N rows.
        x = x_ref[...]                                            # bf16
        h = jnp.dot(x, w1_ref[...],
                    preferred_element_type=jnp.float32) + b1_ref[...]
        h = jnp.maximum(h, 0.0)
        h = jnp.dot(h.astype(w2_ref.dtype), w2_ref[...],
                    preferred_element_type=jnp.float32) + b2_ref[...]
        h = jnp.maximum(h, 0.0)

        # torch.max(x, dim=2) in NCW == max over the point axis here.
        # (N is a multiple of 8, so this reshape is sublane-aligned.)
        feat = jnp.max(h.reshape(tb, n_points, c2), axis=1)       # (tb, c2) f32

        # LinearMultiLayer: Linear + ReLU per layer (no BN/dropout at eval).
        g = jnp.dot(feat.astype(wl1_ref.dtype), wl1_ref[...],
                    preferred_element_type=jnp.float32) + bl1_ref[...]
        g = jnp.maximum(g, 0.0)
        g = jnp.dot(g.astype(wl2_ref.dtype), wl2_ref[...],
                    preferred_element_type=jnp.float32) + bl2_ref[...]
        g = jnp.maximum(g, 0.0)

        # Output Linear (padded to 128 lane-dense columns) + POSE3D_QUAT
        # activation: sigmoid on col 3, tanh on cols >= 4.  Padded columns are
        # exactly 0 (zero weights/bias), tanh(0)=0, and the wrapper slices them
        # off afterwards.
        y = jnp.dot(g.astype(wo_ref.dtype), wo_ref[...],
                    preferred_element_type=jnp.float32) + bo_ref[...]
        col = jax.lax.broadcasted_iota(jnp.int32, y.shape, dimension=1)
        y = jnp.where(col == 3, jax.nn.sigmoid(y), y)
        y = jnp.where(col >= 4, jnp.tanh(y), y)
        o_ref[...] = y

    return kernel


def _pick_tile_b(batch, tile_b):
    """Batch-tile heuristic.

    Big tiles amortize the ~0.35 us per-grid-step overhead and give the linear
    head a large matmul M; but for large single-tile batches we keep >= 2 grid
    steps so v7x's two TensorCores both get a 'parallel' tile.  tb is rounded
    to a multiple of 16 (=> tb*N multiple of 256 at N=16, which also covers
    v5e's 128-row MXU granularity) whenever possible.
    """
    tb = min(tile_b, batch)
    if tb == batch and batch >= 32:      # would be a single step: split for v7x
        tb = -(-batch // 2)
    for m in (16, 8):
        if tb >= m:
            tb -= tb % m
            break
    return max(tb, 1)


def output_simple_forward(x, params, *, tile_b=256, compute_dtype=jnp.bfloat16):
    """x: (B, N, C_in) float32 (NWC layout). Returns (B, label_dim) float32.

    Pass compute_dtype=jnp.float32 for bit-closer validation against an f32
    reference; default bf16 matmul operands target the MXU (f32 accumulation).
    """
    B, N, c_in = x.shape
    out_dim = params["out_w"].shape[1]
    assert out_dim <= 128
    out_pad = 128                         # lane-dense output width

    tb = _pick_tile_b(B, tile_b)
    grid = (pl.cdiv(B, tb),)

    def w(name):
        return params[name].astype(compute_dtype)

    def bias(name):
        return params[name].astype(jnp.float32)

    # Zero-pad the output head to 128 columns (lane-dense stores).
    wo = jnp.pad(w("out_w"), ((0, 0), (0, out_pad - out_dim)))
    bo = jnp.pad(bias("out_b"), ((0, 0), (0, out_pad - out_dim)))

    # Pre-flatten x so the input block is a plain 2-D (tb*N, C_in) slab.
    x_flat = x.reshape(B * N, c_in).astype(compute_dtype)

    args = (
        x_flat,
        w("conv_w1"), bias("conv_b1"), w("conv_w2"), bias("conv_b2"),
        w("lin_w1"), bias("lin_b1"), w("lin_w2"), bias("lin_b2"),
        wo, bo,
    )

    def full_spec(a):  # whole (small) weight/bias array resident in VMEM
        nd = a.ndim
        return pl.BlockSpec(a.shape, lambda i, _nd=nd: (0,) * _nd)

    out = pl.pallas_call(
        _make_kernel(N),
        out_shape=jax.ShapeDtypeStruct((B, out_pad), jnp.float32),
        grid=grid,
        in_specs=[pl.BlockSpec((tb * N, c_in), lambda i: (i, 0))]
                + [full_spec(a) for a in args[1:]],
        out_specs=pl.BlockSpec((tb, out_pad), lambda i: (i, 0)),
        compiler_params=pltpu.CompilerParams(
            dimension_semantics=("parallel",),
            vmem_limit_bytes=32 * 1024 * 1024),
    )(*args)

    return out[:, :out_dim]


def make_params(key, c_in, mlp, linear, out_dim, label_bias):
    """Deterministic synthetic parameters.  Weights stored as (in, out) so the
    kernel computes x @ W + b, matching PyTorch's x @ W.T + b with W=(out,in)."""
    def uniform(k, shape, bound):
        return jax.random.uniform(k, shape, jnp.float32, -bound, bound)

    def xavier(k, shape):  # xavier_uniform_ on the output layer, as in __init__
        fan_in, fan_out = shape
        return uniform(k, shape, (6.0 / (fan_in + fan_out)) ** 0.5)

    ks = jax.random.split(key, 9)
    c1, c2 = mlp
    l1, l2 = linear[1], linear[2]
    return {
        "conv_w1": uniform(ks[0], (c_in, c1), 0.1),
        "conv_b1": uniform(ks[1], (1, c1), 0.1),
        "conv_w2": uniform(ks[2], (c1, c2), 0.1),
        "conv_b2": uniform(ks[3], (1, c2), 0.1),
        "lin_w1": uniform(ks[4], (linear[0], l1), 0.1),
        "lin_b1": uniform(ks[5], (1, l1), 0.1),
        "lin_w2": uniform(ks[6], (l1, l2), 0.1),
        "lin_b2": uniform(ks[7], (1, l2), 0.1),
        "out_w": xavier(ks[8], (l2, out_dim)),
        "out_b": jnp.asarray(label_bias, jnp.float32).reshape(1, out_dim),
    }


def reference_forward(x_nwc, params):
    """Pure-JAX f32 reference (mirrors the PyTorch module)."""
    relu = lambda v: jnp.maximum(v, 0.0)
    h = relu(jnp.einsum("bnc,cd->bnd", x_nwc, params["conv_w1"]) + params["conv_b1"])
    h = relu(jnp.einsum("bnc,cd->bnd", h, params["conv_w2"]) + params["conv_b2"])
    f = jnp.max(h, axis=1)
    g = relu(f @ params["lin_w1"] + params["lin_b1"])
    g = relu(g @ params["lin_w2"] + params["lin_b2"])
    y = g @ params["out_w"] + params["out_b"]
    y = y.at[:, 3].set(jax.nn.sigmoid(y[:, 3]))
    y = y.at[:, 4:].set(jnp.tanh(y[:, 4:]))
    return y


if __name__ == "__main__":
    # Small shapes consistent with the module:
    #   input_dim=32 channels, N=16 points, mlp=[64,128], linear=[128,64,32]
    #   label_type = POSE3D_QUAT -> dim 7, bias sets quaternion identity.
    B, C_IN, N = 2, 32, 16
    MLP = [64, 128]
    LINEAR = [128, 64, 32]
    OUT_DIM = 7
    LABEL_BIAS = [0.0, 0.0, 0.0, 1.0, 0.0, 0.0, 0.0]

    key = jax.random.PRNGKey(0)
    k_x, k_p = jax.random.split(key)

    # PyTorch-layout input (B, C, N), transposed to the kernel's NWC layout.
    x_ncw = jax.random.normal(k_x, (B, C_IN, N), jnp.float32)
    x_nwc = jnp.transpose(x_ncw, (0, 2, 1))

    params = make_params(k_p, C_IN, MLP, LINEAR, OUT_DIM, LABEL_BIAS)

    y = output_simple_forward(x_nwc, params)
    y = jax.block_until_ready(y)
    assert y.shape == (B, OUT_DIM) and y.dtype == jnp.float32

    # Correctness vs. f32 reference (bf16 matmul operands -> loose tolerance).
    y_ref = jax.block_until_ready(reference_forward(x_nwc, params))
    max_err = float(jnp.max(jnp.abs(y - y_ref)))
    assert max_err < 3e-2, f"max abs error {max_err}"

    print("KERNEL_OK")
</pallas_src>

<mosaic_0001>
module attributes {stable_mosaic.version = 11 : i64} {
  func.func @kernel(%arg0: i32, %arg1: memref<32x32xbf16, #tpu.memory_space<vmem>>, %arg2: memref<32x64xbf16, #tpu.memory_space<vmem>>, %arg3: memref<1x64xf32, #tpu.memory_space<vmem>>, %arg4: memref<64x128xbf16, #tpu.memory_space<vmem>>, %arg5: memref<1x128xf32, #tpu.memory_space<vmem>>, %arg6: memref<128x64xbf16, #tpu.memory_space<vmem>>, %arg7: memref<1x64xf32, #tpu.memory_space<vmem>>, %arg8: memref<64x32xbf16, #tpu.memory_space<vmem>>, %arg9: memref<1x32xf32, #tpu.memory_space<vmem>>, %arg10: memref<32x128xbf16, #tpu.memory_space<vmem>>, %arg11: memref<1x128xf32, #tpu.memory_space<vmem>>, %arg12: memref<2x128xf32, #tpu.memory_space<vmem>>) attributes {dimension_semantics = [#tpu.dimension_semantics<parallel>], iteration_bounds = array<i64: 1>, scalar_prefetch = 0 : i64, scratch_operands = 0 : i64, tpu.core_type = #tpu.core_type<tc>, window_params = [{transform_indices = @transform_0, window_bounds = array<i64: 32, 32>}, {pipeline_mode = #tpu.pipeline_mode<synchronous>, transform_indices = @transform_1, window_bounds = array<i64: 32, 64>}, {pipeline_mode = #tpu.pipeline_mode<synchronous>, transform_indices = @transform_2, window_bounds = array<i64: 1, 64>}, {pipeline_mode = #tpu.pipeline_mode<synchronous>, transform_indices = @transform_3, window_bounds = array<i64: 64, 128>}, {pipeline_mode = #tpu.pipeline_mode<synchronous>, transform_indices = @transform_4, window_bounds = array<i64: 1, 128>}, {pipeline_mode = #tpu.pipeline_mode<synchronous>, transform_indices = @transform_5, window_bounds = array<i64: 128, 64>}, {pipeline_mode = #tpu.pipeline_mode<synchronous>, transform_indices = @transform_6, window_bounds = array<i64: 1, 64>}, {pipeline_mode = #tpu.pipeline_mode<synchronous>, transform_indices = @transform_7, window_bounds = array<i64: 64, 32>}, {pipeline_mode = #tpu.pipeline_mode<synchronous>, transform_indices = @transform_8, window_bounds = array<i64: 1, 32>}, {pipeline_mode = #tpu.pipeline_mode<synchronous>, transform_indices = @transform_9, window_bounds = array<i64: 32, 128>}, {pipeline_mode = #tpu.pipeline_mode<synchronous>, transform_indices = @transform_10, window_bounds = array<i64: 1, 128>}, {transform_indices = @transform_11, window_bounds = array<i64: 2, 128>}]} {
    %c0 = arith.constant 0 : index
    %c0_0 = arith.constant 0 : index
    %0 = vector.load %arg1[%c0, %c0_0] : memref<32x32xbf16, #tpu.memory_space<vmem>>, vector<32x32xbf16>
    %c0_1 = arith.constant 0 : index
    %c0_2 = arith.constant 0 : index
    %1 = vector.load %arg2[%c0_1, %c0_2] : memref<32x64xbf16, #tpu.memory_space<vmem>>, vector<32x64xbf16>
    %cst = arith.constant dense<0.000000e+00> : vector<32x64xf32>
    %2 = tpu.matmul %0, %1, %cst {dimension_numbers = #tpu.dot_dimension_numbers<[1], [0], [0], [1], [0, 0, 1, 1], [], []>} : vector<32x32xbf16>, vector<32x64xbf16>, vector<32x64xf32> -> vector<32x64xf32>
    %c0_3 = arith.constant 0 : index
    %c0_4 = arith.constant 0 : index
    %3 = vector.load %arg3[%c0_3, %c0_4] : memref<1x64xf32, #tpu.memory_space<vmem>>, vector<1x64xf32>
    %4 = vector.broadcast %3 : vector<1x64xf32> to vector<32x64xf32>
    %5 = arith.addf %2, %4 : vector<32x64xf32>
    %cst_5 = arith.constant 0.000000e+00 : f32
    %6 = vector.broadcast %cst_5 : f32 to vector<32x64xf32>
    %7 = arith.maximumf %5, %6 : vector<32x64xf32>
    %8 = arith.truncf %7 : vector<32x64xf32> to vector<32x64xbf16>
    %c0_6 = arith.constant 0 : index
    %c0_7 = arith.constant 0 : index
    %9 = vector.load %arg4[%c0_6, %c0_7] : memref<64x128xbf16, #tpu.memory_space<vmem>>, vector<64x128xbf16>
    %cst_8 = arith.constant dense<0.000000e+00> : vector<32x128xf32>
    %10 = tpu.matmul %8, %9, %cst_8 {dimension_numbers = #tpu.dot_dimension_numbers<[1], [0], [0], [1], [0, 0, 1, 1], [], []>} : vector<32x64xbf16>, vector<64x128xbf16>, vector<32x128xf32> -> vector<32x128xf32>
    %c0_9 = arith.constant 0 : index
    %c0_10 = arith.constant 0 : index
    %11 = vector.load %arg5[%c0_9, %c0_10] : memref<1x128xf32, #tpu.memory_space<vmem>>, vector<1x128xf32>
    %12 = vector.broadcast %11 : vector<1x128xf32> to vector<32x128xf32>
    %13 = arith.addf %10, %12 : vector<32x128xf32>
    %cst_11 = arith.constant 0.000000e+00 : f32
    %14 = vector.broadcast %cst_11 : f32 to vector<32x128xf32>
    %15 = arith.maximumf %13, %14 : vector<32x128xf32>
    %16 = vector.shape_cast %15 : vector<32x128xf32> to vector<2x16x128xf32>
    %cst_12 = arith.constant dense<0xFF800000> : vector<2x128xf32>
    %17 = vector.multi_reduction <maximumf>, %16, %cst_12 [1] : vector<2x16x128xf32> to vector<2x128xf32>
    %18 = arith.truncf %17 : vector<2x128xf32> to vector<2x128xbf16>
    %c0_13 = arith.constant 0 : index
    %c0_14 = arith.constant 0 : index
    %19 = vector.load %arg6[%c0_13, %c0_14] : memref<128x64xbf16, #tpu.memory_space<vmem>>, vector<128x64xbf16>
    %cst_15 = arith.constant dense<0.000000e+00> : vector<2x64xf32>
    %20 = tpu.matmul %18, %19, %cst_15 {dimension_numbers = #tpu.dot_dimension_numbers<[1], [0], [0], [1], [0, 0, 1, 1], [], []>} : vector<2x128xbf16>, vector<128x64xbf16>, vector<2x64xf32> -> vector<2x64xf32>
    %c0_16 = arith.constant 0 : index
    %c0_17 = arith.constant 0 : index
    %21 = vector.load %arg7[%c0_16, %c0_17] : memref<1x64xf32, #tpu.memory_space<vmem>>, vector<1x64xf32>
    %22 = vector.broadcast %21 : vector<1x64xf32> to vector<2x64xf32>
    %23 = arith.addf %20, %22 : vector<2x64xf32>
    %cst_18 = arith.constant 0.000000e+00 : f32
    %24 = vector.broadcast %cst_18 : f32 to vector<2x64xf32>
    %25 = arith.maximumf %23, %24 : vector<2x64xf32>
    %26 = arith.truncf %25 : vector<2x64xf32> to vector<2x64xbf16>
    %c0_19 = arith.constant 0 : index
    %c0_20 = arith.constant 0 : index
    %27 = vector.load %arg8[%c0_19, %c0_20] : memref<64x32xbf16, #tpu.memory_space<vmem>>, vector<64x32xbf16>
    %cst_21 = arith.constant dense<0.000000e+00> : vector<2x32xf32>
    %28 = tpu.matmul %26, %27, %cst_21 {dimension_numbers = #tpu.dot_dimension_numbers<[1], [0], [0], [1], [0, 0, 1, 1], [], []>} : vector<2x64xbf16>, vector<64x32xbf16>, vector<2x32xf32> -> vector<2x32xf32>
    %c0_22 = arith.constant 0 : index
    %c0_23 = arith.constant 0 : index
    %29 = vector.load %arg9[%c0_22, %c0_23] : memref<1x32xf32, #tpu.memory_space<vmem>>, vector<1x32xf32>
    %30 = vector.broadcast %29 : vector<1x32xf32> to vector<2x32xf32>
    %31 = arith.addf %28, %30 : vector<2x32xf32>
    %cst_24 = arith.constant 0.000000e+00 : f32
    %32 = vector.broadcast %cst_24 : f32 to vector<2x32xf32>
    %33 = arith.maximumf %31, %32 : vector<2x32xf32>
    %34 = arith.truncf %33 : vector<2x32xf32> to vector<2x32xbf16>
    %c0_25 = arith.constant 0 : index
    %c0_26 = arith.constant 0 : index
    %35 = vector.load %arg10[%c0_25, %c0_26] : memref<32x128xbf16, #tpu.memory_space<vmem>>, vector<32x128xbf16>
    %cst_27 = arith.constant dense<0.000000e+00> : vector<2x128xf32>
    %36 = tpu.matmul %34, %35, %cst_27 {dimension_numbers = #tpu.dot_dimension_numbers<[1], [0], [0], [1], [0, 0, 1, 1], [], []>} : vector<2x32xbf16>, vector<32x128xbf16>, vector<2x128xf32> -> vector<2x128xf32>
    %c0_28 = arith.constant 0 : index
    %c0_29 = arith.constant 0 : index
    %37 = vector.load %arg11[%c0_28, %c0_29] : memref<1x128xf32, #tpu.memory_space<vmem>>, vector<1x128xf32>
    %38 = vector.broadcast %37 : vector<1x128xf32> to vector<2x128xf32>
    %39 = arith.addf %36, %38 : vector<2x128xf32>
    %40 = tpu.iota {dimensions = array<i32: 1>} : vector<2x128xi32>
    %c3_i32 = arith.constant 3 : i32
    %41 = vector.broadcast %c3_i32 : i32 to vector<2x128xi32>
    %42 = arith.cmpi eq, %40, %41 : vector<2x128xi32>
    %43 = arith.negf %39 : vector<2x128xf32>
    %44 = math.exp %43 : vector<2x128xf32>
    %cst_30 = arith.constant 1.000000e+00 : f32
    %45 = vector.broadcast %cst_30 : f32 to vector<2x128xf32>
    %46 = arith.addf %45, %44 : vector<2x128xf32>
    %47 = arith.divf %45, %46 : vector<2x128xf32>
    %48 = arith.select %42, %47, %39 : vector<2x128xi1>, vector<2x128xf32>
    %c4_i32 = arith.constant 4 : i32
    %49 = vector.broadcast %c4_i32 : i32 to vector<2x128xi32>
    %50 = arith.cmpi sge, %40, %49 : vector<2x128xi32>
    %51 = math.tanh %48 : vector<2x128xf32>
    %52 = arith.select %50, %51, %48 : vector<2x128xi1>, vector<2x128xf32>
    %c0_31 = arith.constant 0 : index
    %c0_32 = arith.constant 0 : index
    %53 = vector.load %arg12[%c0_31, %c0_32] : memref<2x128xf32, #tpu.memory_space<vmem>>, vector<2x128xf32>
    tpu.vector_store %arg12[%c0_31, %c0_32], %52 {strides = array<i32>} : memref<2x128xf32, #tpu.memory_space<vmem>>, vector<2x128xf32>,
    return
  }
  func.func @transform_0(%arg0: i32) -> (i32, i32) {
    %c0_i32 = arith.constant 0 : i32
    %c0_i32_0 = arith.constant 0 : i32
    return %arg0, %c0_i32 : i32, i32
  }
  func.func @transform_1(%arg0: i32) -> (i32, i32) {
    %c0_i32 = arith.constant 0 : i32
    %c0_i32_0 = arith.constant 0 : i32
    %c0_i32_1 = arith.constant 0 : i32
    return %c0_i32, %c0_i32_0 : i32, i32
  }
  func.func @transform_2(%arg0: i32) -> (i32, i32) {
    %c0_i32 = arith.constant 0 : i32
    %c0_i32_0 = arith.constant 0 : i32
    %c0_i32_1 = arith.constant 0 : i32
    return %c0_i32, %c0_i32_0 : i32, i32
  }
  func.func @transform_3(%arg0: i32) -> (i32, i32) {
    %c0_i32 = arith.constant 0 : i32
    %c0_i32_0 = arith.constant 0 : i32
    %c0_i32_1 = arith.constant 0 : i32
    return %c0_i32, %c0_i32_0 : i32, i32
  }
  func.func @transform_4(%arg0: i32) -> (i32, i32) {
    %c0_i32 = arith.constant 0 : i32
    %c0_i32_0 = arith.constant 0 : i32
    %c0_i32_1 = arith.constant 0 : i32
    return %c0_i32, %c0_i32_0 : i32, i32
  }
  func.func @transform_5(%arg0: i32) -> (i32, i32) {
    %c0_i32 = arith.constant 0 : i32
    %c0_i32_0 = arith.constant 0 : i32
    %c0_i32_1 = arith.constant 0 : i32
    return %c0_i32, %c0_i32_0 : i32, i32
  }
  func.func @transform_6(%arg0: i32) -> (i32, i32) {
    %c0_i32 = arith.constant 0 : i32
    %c0_i32_0 = arith.constant 0 : i32
    %c0_i32_1 = arith.constant 0 : i32
    return %c0_i32, %c0_i32_0 : i32, i32
  }
  func.func @transform_7(%arg0: i32) -> (i32, i32) {
    %c0_i32 = arith.constant 0 : i32
    %c0_i32_0 = arith.constant 0 : i32
    %c0_i32_1 = arith.constant 0 : i32
    return %c0_i32, %c0_i32_0 : i32, i32
  }
  func.func @transform_8(%arg0: i32) -> (i32, i32) {
    %c0_i32 = arith.constant 0 : i32
    %c0_i32_0 = arith.constant 0 : i32
    %c0_i32_1 = arith.constant 0 : i32
    return %c0_i32, %c0_i32_0 : i32, i32
  }
  func.func @transform_9(%arg0: i32) -> (i32, i32) {
    %c0_i32 = arith.constant 0 : i32
    %c0_i32_0 = arith.constant 0 : i32
    %c0_i32_1 = arith.constant 0 : i32
    return %c0_i32, %c0_i32_0 : i32, i32
  }
  func.func @transform_10(%arg0: i32) -> (i32, i32) {
    %c0_i32 = arith.constant 0 : i32
    %c0_i32_0 = arith.constant 0 : i32
    %c0_i32_1 = arith.constant 0 : i32
    return %c0_i32, %c0_i32_0 : i32, i32
  }
  func.func @transform_11(%arg0: i32) -> (i32, i32) {
    %c0_i32 = arith.constant 0 : i32
    %c0_i32_0 = arith.constant 0 : i32
    return %arg0, %c0_i32 : i32, i32
  }
}

</mosaic_0001>

<llo_original>
// kernel: tpu_custom_call.1
$region0: #{tpu_custom_call.1}
  #allocation0 [shape = 'u32[]', space=smem, size = 0x4, offset = 0x4, fixed_abs, tag = 'smem constant byte address 0x4 - core index']
  #allocation1 [shape = 'u32[144,128]{1,0:T(1,128)}', space=vmem, size = 0x12000, scoped, tag = 'internal scratch']
  %s0 = inlined_call_operand.vmem [shape: bf16[32,32], index: 0, kind: input, shape index: {}]
  %s1 = inlined_call_operand.vmem [shape: bf16[32,64], index: 1, kind: input, shape index: {}]
  %s2 = inlined_call_operand.vmem [shape: f32[1,64], index: 2, kind: input, shape index: {}]
  %s3 = inlined_call_operand.vmem [shape: bf16[64,128], index: 3, kind: input, shape index: {}]
  %s4 = inlined_call_operand.vmem [shape: f32[1,128], index: 4, kind: input, shape index: {}]
  %s5 = inlined_call_operand.vmem [shape: bf16[128,64], index: 5, kind: input, shape index: {}]
  %s6 = inlined_call_operand.vmem [shape: f32[1,64], index: 6, kind: input, shape index: {}]
  %s7 = inlined_call_operand.vmem [shape: bf16[64,32], index: 7, kind: input, shape index: {}]
  %s8 = inlined_call_operand.vmem [shape: f32[1,32], index: 8, kind: input, shape index: {}]
  %s9 = inlined_call_operand.vmem [shape: bf16[32,128], index: 9, kind: input, shape index: {}]
  %s10 = inlined_call_operand.vmem [shape: f32[1,128], index: 10, kind: input, shape index: {}]
  %s11 = inlined_call_operand.hbm [shape: f32[2,128], index: 11, kind: output, shape index: {}]
  %s12 = sld [smem:[#allocation0]]
  $region54: #{tpu_custom_call.1} parent=0
    _
  %s14 = ssub.s32 1, %s12
  %s15 = scalar_select 0, %s14, %s12
  $region1: #{tpu_custom_call.1} parent=0
    #allocation2 [shape = 'u8[1024]{0}', space=vmem, size = 0x400, scoped, tag = 'output window, operand 0, single buffered']
    #allocation3 [shape = 's32[1]{0}', space=sflag, size = 0x4, scoped, tag = 'scoped memory for tpu_custom_call.1']
    %16 = vsyncpa [#allocation3], 0
    // Predicated region
    $region2: #{tpu_custom_call.1} parent=1 // pred_check
      _
    $region3: #{tpu_custom_call.1} parent=1 // pred_check_branch
      %18 = sbr.rel (0) target = $region5
    $region4: #{tpu_custom_call.1} parent=1 // pred_region
      _
    $region5: #{tpu_custom_call.1} parent=1 // pred_fallthru
      _
    // Predicated region
    $region6: #{tpu_custom_call.1} parent=1 // pred_check
      _
    $region7: #{tpu_custom_call.1} parent=1 // pred_check_branch
      %20 = sbr.rel (0) target = $region9
    $region8: #{tpu_custom_call.1} parent=1 // pred_region
      _
    $region9: #{tpu_custom_call.1} parent=1 // pred_fallthru
      _
    // Predicated region
    $region10: #{tpu_custom_call.1} parent=1 // pred_check
      _
    $region11: #{tpu_custom_call.1} parent=1 // pred_check_branch
      %22 = sbr.rel (0) target = $region13
    $region12: #{tpu_custom_call.1} parent=1 // pred_region
      _
    $region13: #{tpu_custom_call.1} parent=1 // pred_fallthru
      _
    // Predicated region
    $region14: #{tpu_custom_call.1} parent=1 // pred_check
      _
    $region15: #{tpu_custom_call.1} parent=1 // pred_check_branch
      %24 = sbr.rel (0) target = $region17
    $region16: #{tpu_custom_call.1} parent=1 // pred_region
      _
    $region17: #{tpu_custom_call.1} parent=1 // pred_fallthru
      _
    // Predicated region
    $region18: #{tpu_custom_call.1} parent=1 // pred_check
      _
    $region19: #{tpu_custom_call.1} parent=1 // pred_check_branch
      %26 = sbr.rel (0) target = $region21
    $region20: #{tpu_custom_call.1} parent=1 // pred_region
      _
    $region21: #{tpu_custom_call.1} parent=1 // pred_fallthru
      _
    // Predicated region
    $region22: #{tpu_custom_call.1} parent=1 // pred_check
      _
    $region23: #{tpu_custom_call.1} parent=1 // pred_check_branch
      %28 = sbr.rel (0) target = $region25
    $region24: #{tpu_custom_call.1} parent=1 // pred_region
      _
    $region25: #{tpu_custom_call.1} parent=1 // pred_fallthru
      _
    // Predicated region
    $region26: #{tpu_custom_call.1} parent=1 // pred_check
      _
    $region27: #{tpu_custom_call.1} parent=1 // pred_check_branch
      %30 = sbr.rel (0) target = $region29
    $region28: #{tpu_custom_call.1} parent=1 // pred_region
      _
    $region29: #{tpu_custom_call.1} parent=1 // pred_fallthru
      _
    // Predicated region
    $region30: #{tpu_custom_call.1} parent=1 // pred_check
      _
    $region31: #{tpu_custom_call.1} parent=1 // pred_check_branch
      %32 = sbr.rel (0) target = $region33
    $region32: #{tpu_custom_call.1} parent=1 // pred_region
      _
    $region33: #{tpu_custom_call.1} parent=1 // pred_fallthru
      _
    // Predicated region
    $region34: #{tpu_custom_call.1} parent=1 // pred_check
      _
    $region35: #{tpu_custom_call.1} parent=1 // pred_check_branch
      %34 = sbr.rel (0) target = $region37
    $region36: #{tpu_custom_call.1} parent=1 // pred_region
      _
    $region37: #{tpu_custom_call.1} parent=1 // pred_fallthru
      _
    // Predicated region
    $region38: #{tpu_custom_call.1} parent=1 // pred_check
      _
    $region39: #{tpu_custom_call.1} parent=1 // pred_check_branch
      %36 = sbr.rel (0) target = $region41
    $region40: #{tpu_custom_call.1} parent=1 // pred_region
      _
    $region41: #{tpu_custom_call.1} parent=1 // pred_fallthru
      _
    // Predicated region
    $region42: #{tpu_custom_call.1} parent=1 // pred_check
      _
    $region43: #{tpu_custom_call.1} parent=1 // pred_check_branch
      %38 = sbr.rel (0) target = $region45
    $region44: #{tpu_custom_call.1} parent=1 // pred_region
      _
    $region45: #{tpu_custom_call.1} parent=1 // pred_fallthru
      _
    %v40 = vld [vmem:[%s0] sm:$0xf]
    %v41 = vld [vmem:[%s0 + $0x4] sm:$0xf]
    %v42 = vld [vmem:[%s0 + $0x8] sm:$0xf]
    %v43 = vld [vmem:[%s0 + $0xc] sm:$0xf]
    %v44 = vld [vmem:[%s1] sm:$0xf]
    %v45 = vld [vmem:[%s1 + $0x4] sm:$0xf]
    %v46 = vld [vmem:[%s1 + $0x8] sm:$0xf]
    %v47 = vld [vmem:[%s1 + $0xc] sm:$0xf]
    %v48 = vld [vmem:[%s2] sm:$0x1]
    %v50 = vlaneseq
    %v51 = vshrl.u32 %v50, 7
    %v52 = vsub.s32 0, %v51
    %v53 = vrot.slane %v48, %v52
    %v59 = vunpack.c.l.b16 %v40
    %v60 = vunpack.c.l.b16 %v41
    %v61 = vunpack.c.l.b16 %v42
    %v62 = vunpack.c.l.b16 %v43
    %v63 = vpack.c.b16 %v60, %v59
    %v64 = vpack.c.b16 %v62, %v61
    %v69 = vunpack.c.l.b16 %v44
    %v70 = vunpack.c.l.b16 %v45
    %v71 = vunpack.c.l.b16 %v46
    %v72 = vunpack.c.l.b16 %v47
    %v73 = vpack.c.b16 %v70, %v69
    %v74 = vpack.c.b16 %v72, %v71
    %vm77 = vcmask 261120
    %v79 = vsel %vm77, %v63, 0
    %v82 = vsel %vm77, %v64, 0
    %84 = vmatprep.subr.bf16.mxu0 0
    %85 = vmatpush1.bf16.msra.mxu0 %v73
    %86 = vmatprep.subr.bf16.mxu0 0
    %87 = vmatpush1.bf16.msra.mxu0 %v74
    %88 = vmatprep.subr.bf16.mxu0 0
    %89 = vmatpush1.bf16.msra.mxu0 0
    %90 = vmatprep.subr.bf16.mxu0 0
    %91 = vmatpush1.bf16.msra.mxu0 0
    %92 = vmatprep.subr.bf16.mxu0 0
    %93 = vmatpush1.bf16.msra.mxu0 0
    %94 = vmatprep.subr.bf16.mxu0 0
    %95 = vmatpush1.bf16.msra.mxu0 0
    %96 = vmatprep.subr.bf16.mxu0 0
    %97 = vmatpush1.bf16.msra.mxu0 0
    %98 = vmatprep.subr.bf16.mxu0 0
    %99 = vmatpush1.bf16.msra.mxu0 0
    %100 = vmatprep.subr.bf16.mxu0 0
    %101 = vmatpush1.bf16.msra.mxu0 0
    %102 = vmatprep.subr.bf16.mxu0 0
    %103 = vmatpush1.bf16.msra.mxu0 0
    %104 = vmatprep.subr.bf16.mxu0 0
    %105 = vmatpush1.bf16.msra.mxu0 0
    %106 = vmatprep.subr.bf16.mxu0 0
    %107 = vmatpush1.bf16.msra.mxu0 0
    %108 = vmatprep.subr.bf16.mxu0 0
    %109 = vmatpush1.bf16.msra.mxu0 0
    %110 = vmatprep.subr.bf16.mxu0 0
    %111 = vmatpush1.bf16.msra.mxu0 0
    %112 = vmatprep.subr.bf16.mxu0 0
    %113 = vmatpush1.bf16.msra.mxu0 0
    %114 = vmatprep.subr.bf16.mxu0 0
    %115 = vmatpush1.bf16.msra.mxu0 0
    %116 = vmatprep.mubr.bf16.mxu0 0
    %117 = vmatmul.mubr.bf16.gmra.mrb[0].mxu0 %v79
    %v118 = vpop.f32.mrb[0].mxu0
    %v119 = vadd.f32 %v53, %v118
    %v120 = vpop.f32.mrb[0].mxu0
    %v121 = vpop.f32.mrb[0].mxu0
    %v122 = vadd.f32 %v53, %v121
    %v123 = vpop.f32.mrb[0].mxu0
    %124 = vmatprep.mubr.bf16.mxu0 0
    %125 = vmatmul.mubr.bf16.gmra.mrb[0].mxu0 %v82
    %v126 = vpop.f32.mrb[0].mxu0
    %v127 = vadd.f32 %v53, %v126
    %v128 = vpop.f32.mrb[0].mxu0
    %v129 = vpop.f32.mrb[0].mxu0
    %v130 = vadd.f32 %v53, %v129
    %v131 = vpop.f32.mrb[0].mxu0
    %132 = vdwg.mxu0
    %v133 = vmax.f32 %v119, 0.0
    %v134 = vmax.f32 %v122, 0.0
    %v135 = vmax.f32 %v127, 0.0
    %v136 = vmax.f32 %v130, 0.0
    %v137 = vpack.c.bf16 %v134, %v133
    %v138 = vpack.c.bf16 %v136, %v135
    %v139 = vld [vmem:[%s3] sm:$0xf]
    %v140 = vld [vmem:[%s3 + $0x4] sm:$0xf]
    %v141 = vld [vmem:[%s3 + $0x8] sm:$0xf]
    %v142 = vld [vmem:[%s3 + $0xc] sm:$0xf]
    %v143 = vld [vmem:[%s3 + $0x10] sm:$0xf]
    %v144 = vld [vmem:[%s3 + $0x14] sm:$0xf]
    %v145 = vld [vmem:[%s3 + $0x18] sm:$0xf]
    %v146 = vld [vmem:[%s3 + $0x1c] sm:$0xf]
    %v147 = vld [vmem:[%s4] sm:$0x1]
    %v149 = vlaneseq
    %v150 = vshrl.u32 %v149, 7
    %v151 = vsub.s32 0, %v150
    %v152 = vrot.slane %v147, %v151
    %v162 = vunpack.c.l.b16 %v139
    %v163 = vunpack.c.l.b16 %v140
    %v164 = vunpack.c.l.b16 %v141
    %v165 = vunpack.c.l.b16 %v142
    %v166 = vunpack.c.l.b16 %v143
    %v167 = vunpack.c.l.b16 %v144
    %v168 = vunpack.c.l.b16 %v145
    %v169 = vunpack.c.l.b16 %v146
    %v170 = vpack.c.b16 %v163, %v162
    %v171 = vpack.c.b16 %v165, %v164
    %v172 = vpack.c.b16 %v167, %v166
    %v173 = vpack.c.b16 %v169, %v168
    %vm178 = vcmask 523264
    %v180 = vsel %vm178, %v137, 0
    %v183 = vsel %vm178, %v138, 0
    %185 = vmatprep.subr.bf16.mxu0 0
    %186 = vmatpush1.bf16.msra.mxu0 %v170
    %187 = vmatprep.subr.bf16.mxu0 0
    %188 = vmatpush1.bf16.msra.mxu0 %v171
    %189 = vmatprep.subr.bf16.mxu0 0
    %190 = vmatpush1.bf16.msra.mxu0 %v172
    %191 = vmatprep.subr.bf16.mxu0 0
    %192 = vmatpush1.bf16.msra.mxu0 %v173
    %193 = vmatprep.subr.bf16.mxu0 0
    %194 = vmatpush1.bf16.msra.mxu0 0
    %195 = vmatprep.subr.bf16.mxu0 0
    %196 = vmatpush1.bf16.msra.mxu0 0
    %197 = vmatprep.subr.bf16.mxu0 0
    %198 = vmatpush1.bf16.msra.mxu0 0
    %199 = vmatprep.subr.bf16.mxu0 0
    %200 = vmatpush1.bf16.msra.mxu0 0
    %201 = vmatprep.subr.bf16.mxu0 0
    %202 = vmatpush1.bf16.msra.mxu0 0
    %203 = vmatprep.subr.bf16.mxu0 0
    %204 = vmatpush1.bf16.msra.mxu0 0
    %205 = vmatprep.subr.bf16.mxu0 0
    %206 = vmatpush1.bf16.msra.mxu0 0
    %207 = vmatprep.subr.bf16.mxu0 0
    %208 = vmatpush1.bf16.msra.mxu0 0
    %209 = vmatprep.subr.bf16.mxu0 0
    %210 = vmatpush1.bf16.msra.mxu0 0
    %211 = vmatprep.subr.bf16.mxu0 0
    %212 = vmatpush1.bf16.msra.mxu0 0
    %213 = vmatprep.subr.bf16.mxu0 0
    %214 = vmatpush1.bf16.msra.mxu0 0
    %215 = vmatprep.subr.bf16.mxu0 0
    %216 = vmatpush1.bf16.msra.mxu0 0
    %217 = vmatprep.mubr.bf16.mxu0 0
    %218 = vmatmul.mubr.bf16.gmra.mrb[0].mxu0 %v180
    %v219 = vpop.f32.mrb[0].mxu0
    %v220 = vadd.f32 %v152, %v219
    %v221 = vpop.f32.mrb[0].mxu0
    %v222 = vpop.f32.mrb[0].mxu0
    %v223 = vadd.f32 %v152, %v222
    %v224 = vpop.f32.mrb[0].mxu0
    %225 = vmatprep.mubr.bf16.mxu0 0
    %226 = vmatmul.mubr.bf16.gmra.mrb[0].mxu0 %v183
    %v227 = vpop.f32.mrb[0].mxu0
    %v228 = vadd.f32 %v152, %v227
    %v229 = vpop.f32.mrb[0].mxu0
    %v230 = vpop.f32.mrb[0].mxu0
    %v231 = vadd.f32 %v152, %v230
    %v232 = vpop.f32.mrb[0].mxu0
    %233 = vdwg.mxu0
    %v234 = vmax.f32 %v220, 0.0
    %v235 = vmax.f32 %v223, 0.0
    %v236 = vmax.f32 %v228, 0.0
    %v237 = vmax.f32 %v231, 0.0
    %v238 = vmax.f32 %v234, %v235
    %v239 = vrot.slane %v238, 4
    %v240 = vmax.f32 %v238, %v239
    %v241 = vrot.slane %v240, 2
    %v242 = vmax.f32 %v240, %v241
    %v243 = vrot.slane %v242, 1
    %v244 = vmax.f32 %v242, %v243
    %v245 = vmax.f32 %v236, %v237
    %v246 = vrot.slane %v245, 4
    %v247 = vmax.f32 %v245, %v246
    %v248 = vrot.slane %v247, 2
    %v249 = vmax.f32 %v247, %v248
    %v250 = vrot.slane %v249, 1
    %v251 = vmax.f32 %v249, %v250
    %v252 = vpack.c.bf16 %v244, %v244
    %v253 = vpack.c.bf16 %v251, %v251
    %v254 = vld [vmem:[%s5] sm:$0xf]
    %v255 = vld [vmem:[%s5 + $0x4] sm:$0xf]
    %v256 = vld [vmem:[%s5 + $0x8] sm:$0xf]
    %v257 = vld [vmem:[%s5 + $0xc] sm:$0xf]
    %v258 = vld [vmem:[%s5 + $0x10] sm:$0xf]
    %v259 = vld [vmem:[%s5 + $0x14] sm:$0xf]
    %v260 = vld [vmem:[%s5 + $0x18] sm:$0xf]
    %v261 = vld [vmem:[%s5 + $0x1c] sm:$0xf]
    %v262 = vld [vmem:[%s5 + $0x20] sm:$0xf]
    %v263 = vld [vmem:[%s5 + $0x24] sm:$0xf]
    %v264 = vld [vmem:[%s5 + $0x28] sm:$0xf]
    %v265 = vld [vmem:[%s5 + $0x2c] sm:$0xf]
    %v266 = vld [vmem:[%s5 + $0x30] sm:$0xf]
    %v267 = vld [vmem:[%s5 + $0x34] sm:$0xf]
    %v268 = vld [vmem:[%s5 + $0x38] sm:$0xf]
    %v269 = vld [vmem:[%s5 + $0x3c] sm:$0xf]
    %v270 = vld [vmem:[%s6] sm:$0x1]
    %v272 = vlaneseq
    %v273 = vshrl.u32 %v272, 7
    %v274 = vsub.s32 0, %v273
    %v275 = vrot.slane %v270, %v274
    %v279 = vunpack.c.l.b16 %v252
    %v280 = vunpack.c.l.b16 %v253
    %vm281 = vcmask 1041409
    %v282 = vsel %vm281, %v280, %v279
    %v283 = vpack.c.b16 %v282, %v282
    %v301 = vunpack.c.l.b16 %v254
    %v302 = vunpack.c.l.b16 %v255
    %v303 = vunpack.c.l.b16 %v256
    %v304 = vunpack.c.l.b16 %v257
    %v305 = vunpack.c.l.b16 %v258
    %v306 = vunpack.c.l.b16 %v259
    %v307 = vunpack.c.l.b16 %v260
    %v308 = vunpack.c.l.b16 %v261
    %v309 = vunpack.c.l.b16 %v262
    %v310 = vunpack.c.l.b16 %v263
    %v311 = vunpack.c.l.b16 %v264
    %v312 = vunpack.c.l.b16 %v265
    %v313 = vunpack.c.l.b16 %v266
    %v314 = vunpack.c.l.b16 %v267
    %v315 = vunpack.c.l.b16 %v268
    %v316 = vunpack.c.l.b16 %v269
    %v317 = vpack.c.b16 %v302, %v301
    %v318 = vpack.c.b16 %v304, %v303
    %v319 = vpack.c.b16 %v306, %v305
    %v320 = vpack.c.b16 %v308, %v307
    %v321 = vpack.c.b16 %v310, %v309
    %v322 = vpack.c.b16 %v312, %v311
    %v323 = vpack.c.b16 %v314, %v313
    %v324 = vpack.c.b16 %v316, %v315
    %333 = vmatprep.subr.bf16.mxu0 0
    %334 = vmatpush1.bf16.msra.mxu0 %v317
    %335 = vmatprep.subr.bf16.mxu0 0
    %336 = vmatpush1.bf16.msra.mxu0 %v318
    %337 = vmatprep.subr.bf16.mxu0 0
    %338 = vmatpush1.bf16.msra.mxu0 %v319
    %339 = vmatprep.subr.bf16.mxu0 0
    %340 = vmatpush1.bf16.msra.mxu0 %v320
    %341 = vmatprep.subr.bf16.mxu0 0
    %342 = vmatpush1.bf16.msra.mxu0 %v321
    %343 = vmatprep.subr.bf16.mxu0 0
    %344 = vmatpush1.bf16.msra.mxu0 %v322
    %345 = vmatprep.subr.bf16.mxu0 0
    %346 = vmatpush1.bf16.msra.mxu0 %v323
    %347 = vmatprep.subr.bf16.mxu0 0
    %348 = vmatpush1.bf16.msra.mxu0 %v324
    %349 = vmatprep.subr.bf16.mxu0 0
    %350 = vmatpush1.bf16.msra.mxu0 0
    %351 = vmatprep.subr.bf16.mxu0 0
    %352 = vmatpush1.bf16.msra.mxu0 0
    %353 = vmatprep.subr.bf16.mxu0 0
    %354 = vmatpush1.bf16.msra.mxu0 0
    %355 = vmatprep.subr.bf16.mxu0 0
    %356 = vmatpush1.bf16.msra.mxu0 0
    %357 = vmatprep.subr.bf16.mxu0 0
    %358 = vmatpush1.bf16.msra.mxu0 0
    %359 = vmatprep.subr.bf16.mxu0 0
    %360 = vmatpush1.bf16.msra.mxu0 0
    %361 = vmatprep.subr.bf16.mxu0 0
    %362 = vmatpush1.bf16.msra.mxu0 0
    %363 = vmatprep.subr.bf16.mxu0 0
    %364 = vmatpush1.bf16.msra.mxu0 0
    %365 = vmatprep.mubr.bf16.mxu0 0
    %366 = vmatmul.mubr.bf16.gmra.mrb[0].mxu0 %v283
    %v367 = vpop.f32.mrb[0].mxu0
    %v368 = vadd.f32 %v275, %v367
    %v369 = vpop.f32.mrb[0].mxu0
    %v370 = vpop.f32.mrb[0].mxu0
    %v371 = vpop.f32.mrb[0].mxu0
    %372 = vdwg.mxu0
    %v373 = vmax.f32 %v368, 0.0
    %v374 = vpack.c.bf16 %v373, %v373
    %v375 = vld [vmem:[%s7] sm:$0xf]
    %v376 = vld [vmem:[%s7 + $0x4] sm:$0xf]
    %v377 = vld [vmem:[%s7 + $0x8] sm:$0xf]
    %v378 = vld [vmem:[%s7 + $0xc] sm:$0xf]
    %v379 = vld [vmem:[%s7 + $0x10] sm:$0xf]
    %v380 = vld [vmem:[%s7 + $0x14] sm:$0xf]
    %v381 = vld [vmem:[%s7 + $0x18] sm:$0xf]
    %v382 = vld [vmem:[%s7 + $0x1c] sm:$0xf]
    %v383 = vld [vmem:[%s8] sm:$0x1]
    %v385 = vlaneseq
    %v386 = vshrl.u32 %v385, 7
    %v387 = vsub.s32 0, %v386
    %v388 = vrot.slane %v383, %v387
    %v398 = vunpack.c.l.b16 %v375
    %v399 = vunpack.c.l.b16 %v376
    %v400 = vunpack.c.l.b16 %v377
    %v401 = vunpack.c.l.b16 %v378
    %v402 = vunpack.c.l.b16 %v379
    %v403 = vunpack.c.l.b16 %v380
    %v404 = vunpack.c.l.b16 %v381
    %v405 = vunpack.c.l.b16 %v382
    %v406 = vpack.c.b16 %v399, %v398
    %v407 = vpack.c.b16 %v401, %v400
    %v408 = vpack.c.b16 %v403, %v402
    %v409 = vpack.c.b16 %v405, %v404
    %v415 = vsel %vm178, %v374, 0
    %417 = vmatprep.subr.bf16.mxu0 0
    %418 = vmatpush1.bf16.msra.mxu0 %v406
    %419 = vmatprep.subr.bf16.mxu0 0
    %420 = vmatpush1.bf16.msra.mxu0 %v407
    %421 = vmatprep.subr.bf16.mxu0 0
    %422 = vmatpush1.bf16.msra.mxu0 %v408
    %423 = vmatprep.subr.bf16.mxu0 0
    %424 = vmatpush1.bf16.msra.mxu0 %v409
    %425 = vmatprep.subr.bf16.mxu0 0
    %426 = vmatpush1.bf16.msra.mxu0 0
    %427 = vmatprep.subr.bf16.mxu0 0
    %428 = vmatpush1.bf16.msra.mxu0 0
    %429 = vmatprep.subr.bf16.mxu0 0
    %430 = vmatpush1.bf16.msra.mxu0 0
    %431 = vmatprep.subr.bf16.mxu0 0
    %432 = vmatpush1.bf16.msra.mxu0 0
    %433 = vmatprep.subr.bf16.mxu0 0
    %434 = vmatpush1.bf16.msra.mxu0 0
    %435 = vmatprep.subr.bf16.mxu0 0
    %436 = vmatpush1.bf16.msra.mxu0 0
    %437 = vmatprep.subr.bf16.mxu0 0
    %438 = vmatpush1.bf16.msra.mxu0 0
    %439 = vmatprep.subr.bf16.mxu0 0
    %440 = vmatpush1.bf16.msra.mxu0 0
    %441 = vmatprep.subr.bf16.mxu0 0
    %442 = vmatpush1.bf16.msra.mxu0 0
    %443 = vmatprep.subr.bf16.mxu0 0
    %444 = vmatpush1.bf16.msra.mxu0 0
    %445 = vmatprep.subr.bf16.mxu0 0
    %446 = vmatpush1.bf16.msra.mxu0 0
    %447 = vmatprep.subr.bf16.mxu0 0
    %448 = vmatpush1.bf16.msra.mxu0 0
    %449 = vmatprep.mubr.bf16.mxu0 0
    %450 = vmatmul.mubr.bf16.gmra.mrb[0].mxu0 %v415
    %v451 = vpop.f32.mrb[0].mxu0
    %v452 = vadd.f32 %v388, %v451
    %v453 = vpop.f32.mrb[0].mxu0
    %v454 = vpop.f32.mrb[0].mxu0
    %v455 = vpop.f32.mrb[0].mxu0
    %456 = vdwg.mxu0
    %v457 = vmax.f32 %v452, 0.0
    %v458 = vpack.c.bf16 %v457, %v457
    %v459 = vld [vmem:[%s9] sm:$0xf]
    %v460 = vld [vmem:[%s9 + $0x4] sm:$0xf]
    %v461 = vld [vmem:[%s9 + $0x8] sm:$0xf]
    %v462 = vld [vmem:[%s9 + $0xc] sm:$0xf]
    %v463 = vld [vmem:[%s10] sm:$0x1]
    %v465 = vlaneseq
    %v466 = vshrl.u32 %v465, 7
    %v467 = vsub.s32 0, %v466
    %v468 = vrot.slane %v463, %v467
    %v474 = vunpack.c.l.b16 %v459
    %v475 = vunpack.c.l.b16 %v460
    %v476 = vunpack.c.l.b16 %v461
    %v477 = vunpack.c.l.b16 %v462
    %v478 = vpack.c.b16 %v475, %v474
    %v479 = vpack.c.b16 %v477, %v476
    %v483 = vsel %vm77, %v458, 0
    %485 = vmatprep.subr.bf16.mxu0 0
    %486 = vmatpush1.bf16.msra.mxu0 %v478
    %487 = vmatprep.subr.bf16.mxu0 0
    %488 = vmatpush1.bf16.msra.mxu0 %v479
    %489 = vmatprep.subr.bf16.mxu0 0
    %490 = vmatpush1.bf16.msra.mxu0 0
    %491 = vmatprep.subr.bf16.mxu0 0
    %492 = vmatpush1.bf16.msra.mxu0 0
    %493 = vmatprep.subr.bf16.mxu0 0
    %494 = vmatpush1.bf16.msra.mxu0 0
    %495 = vmatprep.subr.bf16.mxu0 0
    %496 = vmatpush1.bf16.msra.mxu0 0
    %497 = vmatprep.subr.bf16.mxu0 0
    %498 = vmatpush1.bf16.msra.mxu0 0
    %499 = vmatprep.subr.bf16.mxu0 0
    %500 = vmatpush1.bf16.msra.mxu0 0
    %501 = vmatprep.subr.bf16.mxu0 0
    %502 = vmatpush1.bf16.msra.mxu0 0
    %503 = vmatprep.subr.bf16.mxu0 0
    %504 = vmatpush1.bf16.msra.mxu0 0
    %505 = vmatprep.subr.bf16.mxu0 0
    %506 = vmatpush1.bf16.msra.mxu0 0
    %507 = vmatprep.subr.bf16.mxu0 0
    %508 = vmatpush1.bf16.msra.mxu0 0
    %509 = vmatprep.subr.bf16.mxu0 0
    %510 = vmatpush1.bf16.msra.mxu0 0
    %511 = vmatprep.subr.bf16.mxu0 0
    %512 = vmatpush1.bf16.msra.mxu0 0
    %513 = vmatprep.subr.bf16.mxu0 0
    %514 = vmatpush1.bf16.msra.mxu0 0
    %515 = vmatprep.subr.bf16.mxu0 0
    %516 = vmatpush1.bf16.msra.mxu0 0
    %517 = vmatprep.mubr.bf16.mxu0 0
    %518 = vmatmul.mubr.bf16.gmra.mrb[0].mxu0 %v483
    %v519 = vpop.f32.mrb[0].mxu0
    %v520 = vadd.f32 %v468, %v519
    %v521 = vpop.f32.mrb[0].mxu0
    %v522 = vpop.f32.mrb[0].mxu0
    %v523 = vpop.f32.mrb[0].mxu0
    %524 = vdwg.mxu0
    %v525 = vlaneseq
    %v526 = vand.u32 %v525, 127
    %vm527 = vcmp.eq.s32.totalorder %v526, 3
    %v528 = vxor.u32 %v520, 2147483648
    %v529 = vmul.f32 %v528, 1.442695
    %v530 = vpow.pop %v529
    %v531 = vadd.f32 %v530, 1.0
    %v532 = vrcp.pop %v531
    %v533 = vmul.f32 1.0, %v532
    %v534 = vsel %vm527, %v533, %v520
    %vm535 = vcmp.ge.s32.totalorder %v526, 4
    %v536 = vtanh.pop %v534
    %v537 = vsel %vm535, %v536, %v534
    %538 = vst [vmem:[#allocation2] sm:$0x3] %v537
    // Predicated region
    $region46: #{tpu_custom_call.1} parent=1 // pred_check
      _
    $region47: #{tpu_custom_call.1} parent=1 // pred_check_branch
      %540 = sbr.rel (0) target = $region49
    $region48: #{tpu_custom_call.1} parent=1 // pred_region
      %s542 = ssub.s32 32, 32
      %543 = vsyncadd [#allocation3], %s542
      %s545 = sshll.u32 [#allocation2], 4
      %s546 = int_to_ptr.vmem [resolvable:$true] %s545
      %548 = dma.vmem_to_hbm [thread:$0]  %s546, 32, %s11, [#allocation3]
    $region49: #{tpu_custom_call.1} parent=1 // pred_fallthru
      _
    // Predicated region
    $region50: #{tpu_custom_call.1} parent=1 // pred_check
      _
    $region51: #{tpu_custom_call.1} parent=1 // pred_check_branch
      %550 = sbr.rel (0) target = $region53
    $region52: #{tpu_custom_call.1} parent=1 // pred_region
      %551 = dma.done [#allocation3], 32
    $region53: #{tpu_custom_call.1} parent=1 // pred_fallthru
      _
    %552 = vsyncpa [#allocation3], 1

</llo_original>
